<compile_context>
chip_gen: v6e
topology: v6e:2x2x1
jax: 0.10.0
libtpu: 0.0.40
codegen_flags: <defaults>
</compile_context>

<pallas_src>
import jax
import jax.numpy as jnp
from jax import lax
from jax.experimental import pallas as pl
from jax.experimental.pallas import tpu as pltpu

NEG = -1e30   # large-negative stand-in for -inf (keeps all arithmetic finite)


def _logaddexp2(a, b):
    # max + log(1 + exp(-|a-b|)) form: short, finite-safe with NEG sentinels.
    m = jnp.maximum(a, b)
    return m + jnp.log(1.0 + jnp.exp(-jnp.abs(a - b)))


def _forward_sum_kernel(in_lens_ref, out_lens_ref, lp_ref, out_ref):
    # lp_ref: (1, T, G, Cpad) raw (unnormalized) log-probs; class 0 = blank.
    _, T, G, Cpad = lp_ref.shape
    base = pl.program_id(0) * G

    lane_idx = lax.broadcasted_iota(jnp.int32, (G, Cpad), 1)
    row_col = lax.broadcasted_iota(jnp.int32, (G, 1), 0)

    # Per-row key / query lengths as (G, 1) columns; group max query length
    # (scalar, stays in sregs) bounds the serial trip count.
    klens = jnp.zeros((G, 1), jnp.int32)
    qlens = jnp.zeros((G, 1), jnp.int32)
    t_max = jnp.int32(1)
    for r in range(G):
        kl = in_lens_ref[base + r]
        ql = out_lens_ref[base + r]
        klens = jnp.where(row_col == r, kl, klens)
        qlens = jnp.where(row_col == r, ql, qlens)
        t_max = jnp.maximum(t_max, ql)
    t_max = jnp.minimum(t_max, T)

    mask2d = lane_idx <= klens          # valid classes 0..key_len   (G, Cpad)
    is_lane0 = lane_idx == 0

    def row_logsumexp(e):               # masked softmax normalizer Z_t, (G, 1)
        x = jnp.where(mask2d, e, NEG)
        m = jnp.max(x, axis=-1, keepdims=True)
        return m + jnp.log(jnp.sum(jnp.exp(x - m), axis=-1, keepdims=True))

    # CTC forward (alpha) recursion on unnormalized emissions, split states:
    #   blank state B_k (s = 2k)   at lane k,   k = 0..key_len
    #   label state L_k (s = 2k+1) at lane k+1 (== its class index)
    # Targets 1..K are all distinct, so the skip transition is always legal:
    #   B_k(t) = e(t,0)   + LSE(B_k, L_{k-1})            (both at lane k)
    #   L_k(t) = e(t,k+1) + LSE(L_k, B_k, L_{k-1}) = e(t,k+1) + LSE(L_k, lse2[k])
    e0 = lp_ref[0, 0].astype(jnp.float32)
    alpha_B = jnp.where(is_lane0, e0, NEG)            # alpha[0, 0]
    alpha_L = jnp.where(lane_idx == 1, e0, NEG)       # alpha[0, 1]
    zsum0 = row_logsumexp(e0)                         # frame 0 is always live

    def body(t, carry):
        aB, aL, zsum = carry
        e_t = lp_ref[0, t].astype(jnp.float32)        # aligned (G, Cpad) load
        lse2 = _logaddexp2(aB, aL)                    # shared by B and L updates
        newB = e_t[:, 0:1] + lse2
        prev = pltpu.roll(lse2, shift=1, axis=1)      # lane c <- lse2[c-1]
        newL = e_t + _logaddexp2(aL, prev)
        newL = jnp.where(is_lane0, NEG, newL)         # lane 0: no label state,
                                                      # also kills roll wraparound
        live = t < qlens                              # (G, 1) freeze finished rows
        zsum = zsum + jnp.where(live, row_logsumexp(e_t), 0.0)
        return (jnp.where(live, newB, aB), jnp.where(live, newL, aL), zsum)

    alpha_B, alpha_L, zsum = lax.fori_loop(1, t_max, body,
                                           (alpha_B, alpha_L, zsum0))

    # loss_b = -(LSE(alpha[S-1], alpha[S-2]) - sum_t Z_t) / key_len
    # both end states (B_K and L_{K-1}) live at lane key_len.
    sel = lane_idx == klens
    avb = jnp.where(sel, alpha_B, NEG)
    avl = jnp.where(sel, alpha_L, NEG)
    m = jnp.maximum(jnp.max(avb, axis=-1, keepdims=True),
                    jnp.max(avl, axis=-1, keepdims=True))
    ll = m + jnp.log(jnp.sum(jnp.exp(avb - m), axis=-1, keepdims=True) +
                     jnp.sum(jnp.exp(avl - m), axis=-1, keepdims=True))
    ll = ll - zsum                                     # apply deferred softmax norm
    denom = jnp.maximum(klens, 1).astype(jnp.float32)
    # CTCLoss(reduction='mean') with one sample: divide by target length;
    # zero_infinity=True: infeasible alignments contribute 0.
    loss = jnp.where(ll < -1e20, 0.0, -ll / denom)     # (G, 1)

    out_ref[...] = jnp.broadcast_to(loss.reshape(1, G, 1), out_ref.shape)


def forward_sum_loss(attn_logprob, in_lens, out_lens, blank_logprob=-1.0):
    """attn_logprob: (B, 1, T_query, K_max) float; in_lens/out_lens: (B,) int."""
    B, _, T, K = attn_logprob.shape
    C = K + 1                                    # classes incl. blank (class 0)
    Cpad = max(128, ((C + 127) // 128) * 128)    # lane-aligned class dim
    group = 16 if B > 16 else 8                  # >=2 groups for v7x megacore when possible
    B_pad = ((B + group - 1) // group) * group
    n_groups = B_pad // group

    x = attn_logprob[:, 0].astype(jnp.float32)   # (B, T, K)
    in_l = in_lens.astype(jnp.int32)
    out_l = out_lens.astype(jnp.int32)

    # Length-sorted grouping: the serial recursion runs to the group's max
    # query length, so keep similar lengths together (mean is order-invariant).
    if B > group:
        order = jnp.argsort(out_l)
        x = x[order]
        in_l = in_l[order]
        out_l = out_l[order]

    # Prepend the blank column, pad class/batch dims, then a group-major
    # contiguous layout so each grid step is one contiguous DMA.
    x = jnp.pad(x, ((0, B_pad - B), (0, 0), (1, Cpad - C)),
                constant_values=blank_logprob)                 # (B_pad, T, Cpad)
    x = x.reshape(n_groups, group, T, Cpad).transpose(0, 2, 1, 3)  # (ng,T,G,Cpad)
    in_lp = jnp.pad(in_l, (0, B_pad - B), constant_values=1)
    out_lp = jnp.pad(out_l, (0, B_pad - B), constant_values=1)

    blk_bytes = T * group * Cpad * 4
    vmem_limit = int(min(max(2 * blk_bytes + (8 << 20), 32 << 20), 128 << 20))

    losses = pl.pallas_call(
        _forward_sum_kernel,
        out_shape=jax.ShapeDtypeStruct((n_groups, group, 128), jnp.float32),
        grid_spec=pltpu.PrefetchScalarGridSpec(
            num_scalar_prefetch=2,
            grid=(n_groups,),
            in_specs=[pl.BlockSpec((1, T, group, Cpad),
                                   lambda g, inl, outl: (g, 0, 0, 0))],
            out_specs=pl.BlockSpec((1, group, 128),
                                   lambda g, inl, outl: (g, 0, 0)),
        ),
        compiler_params=pltpu.CompilerParams(
            dimension_semantics=("parallel",),
            vmem_limit_bytes=vmem_limit),
    )(in_lp, out_lp, x)

    per_sample = losses[:, :, 0].reshape(B_pad)[:B]
    return jnp.sum(per_sample) / B


if __name__ == "__main__":
    key = jax.random.PRNGKey(0)
    B, T_query, K_max = 2, 16, 8
    attn_logprob = jax.random.normal(key, (B, 1, T_query, K_max),
                                     dtype=jnp.float32)
    in_lens = jnp.array([8, 6], dtype=jnp.int32)     # text (key) lengths
    out_lens = jnp.array([16, 12], dtype=jnp.int32)  # mel (query) lengths

    loss = forward_sum_loss(attn_logprob, in_lens, out_lens, blank_logprob=-1.0)
    jax.block_until_ready(loss)
    print("KERNEL_OK")
</pallas_src>

<mosaic_0001>
module attributes {stable_mosaic.version = 11 : i64} {
  func.func @_forward_sum_kernel(%arg0: i32, %arg1: memref<8xi32, #tpu.memory_space<smem>>, %arg2: memref<8xi32, #tpu.memory_space<smem>>, %arg3: memref<1x16x8x128xf32, #tpu.memory_space<vmem>>, %arg4: memref<1x8x128xf32, #tpu.memory_space<vmem>>) attributes {dimension_semantics = [#tpu.dimension_semantics<parallel>], iteration_bounds = array<i64: 1>, scalar_prefetch = 2 : i64, scratch_operands = 0 : i64, tpu.core_type = #tpu.core_type<tc>, window_params = [{transform_indices = @transform_0, window_bounds = array<i64: 1, 16, 8, 128>}, {transform_indices = @transform_1, window_bounds = array<i64: 1, 8, 128>}]} {
    %c8_i32 = arith.constant 8 : i32
    %0 = arith.muli %arg0, %c8_i32 : i32
    %1 = tpu.iota {dimensions = array<i32: 1>} : vector<8x128xi32>
    %2 = tpu.iota {dimensions = array<i32: 0>} : vector<8x1xi32>
    %c0_i32 = arith.constant 0 : i32
    %3 = vector.broadcast %c0_i32 : i32 to vector<8x1xi32>
    %c0_i32_0 = arith.constant 0 : i32
    %4 = vector.broadcast %c0_i32_0 : i32 to vector<8x1xi32>
    %c0_i32_1 = arith.constant 0 : i32
    %5 = arith.addi %0, %c0_i32_1 : i32
    %6 = arith.index_cast %5 : i32 to index
    %7 = memref.load %arg1[%6] : memref<8xi32, #tpu.memory_space<smem>>
    %c0_i32_2 = arith.constant 0 : i32
    %8 = arith.addi %0, %c0_i32_2 : i32
    %9 = arith.index_cast %8 : i32 to index
    %10 = memref.load %arg2[%9] : memref<8xi32, #tpu.memory_space<smem>>
    %c0_i32_3 = arith.constant 0 : i32
    %11 = vector.broadcast %c0_i32_3 : i32 to vector<8x1xi32>
    %12 = arith.cmpi eq, %2, %11 : vector<8x1xi32>
    %13 = vector.broadcast %7 : i32 to vector<8x1xi32>
    %14 = arith.select %12, %13, %3 : vector<8x1xi1>, vector<8x1xi32>
    %c0_i32_4 = arith.constant 0 : i32
    %15 = vector.broadcast %c0_i32_4 : i32 to vector<8x1xi32>
    %16 = arith.cmpi eq, %2, %15 : vector<8x1xi32>
    %17 = vector.broadcast %10 : i32 to vector<8x1xi32>
    %18 = arith.select %16, %17, %4 : vector<8x1xi1>, vector<8x1xi32>
    %c1_i32 = arith.constant 1 : i32
    %19 = arith.maxsi %c1_i32, %10 : i32
    %c1_i32_5 = arith.constant 1 : i32
    %20 = arith.addi %0, %c1_i32_5 : i32
    %21 = arith.index_cast %20 : i32 to index
    %22 = memref.load %arg1[%21] : memref<8xi32, #tpu.memory_space<smem>>
    %c1_i32_6 = arith.constant 1 : i32
    %23 = arith.addi %0, %c1_i32_6 : i32
    %24 = arith.index_cast %23 : i32 to index
    %25 = memref.load %arg2[%24] : memref<8xi32, #tpu.memory_space<smem>>
    %c1_i32_7 = arith.constant 1 : i32
    %26 = vector.broadcast %c1_i32_7 : i32 to vector<8x1xi32>
    %27 = arith.cmpi eq, %2, %26 : vector<8x1xi32>
    %28 = vector.broadcast %22 : i32 to vector<8x1xi32>
    %29 = arith.select %27, %28, %14 : vector<8x1xi1>, vector<8x1xi32>
    %c1_i32_8 = arith.constant 1 : i32
    %30 = vector.broadcast %c1_i32_8 : i32 to vector<8x1xi32>
    %31 = arith.cmpi eq, %2, %30 : vector<8x1xi32>
    %32 = vector.broadcast %25 : i32 to vector<8x1xi32>
    %33 = arith.select %31, %32, %18 : vector<8x1xi1>, vector<8x1xi32>
    %34 = arith.maxsi %19, %25 : i32
    %c2_i32 = arith.constant 2 : i32
    %35 = arith.addi %0, %c2_i32 : i32
    %36 = arith.index_cast %35 : i32 to index
    %37 = memref.load %arg1[%36] : memref<8xi32, #tpu.memory_space<smem>>
    %c2_i32_9 = arith.constant 2 : i32
    %38 = arith.addi %0, %c2_i32_9 : i32
    %39 = arith.index_cast %38 : i32 to index
    %40 = memref.load %arg2[%39] : memref<8xi32, #tpu.memory_space<smem>>
    %c2_i32_10 = arith.constant 2 : i32
    %41 = vector.broadcast %c2_i32_10 : i32 to vector<8x1xi32>
    %42 = arith.cmpi eq, %2, %41 : vector<8x1xi32>
    %43 = vector.broadcast %37 : i32 to vector<8x1xi32>
    %44 = arith.select %42, %43, %29 : vector<8x1xi1>, vector<8x1xi32>
    %c2_i32_11 = arith.constant 2 : i32
    %45 = vector.broadcast %c2_i32_11 : i32 to vector<8x1xi32>
    %46 = arith.cmpi eq, %2, %45 : vector<8x1xi32>
    %47 = vector.broadcast %40 : i32 to vector<8x1xi32>
    %48 = arith.select %46, %47, %33 : vector<8x1xi1>, vector<8x1xi32>
    %49 = arith.maxsi %34, %40 : i32
    %c3_i32 = arith.constant 3 : i32
    %50 = arith.addi %0, %c3_i32 : i32
    %51 = arith.index_cast %50 : i32 to index
    %52 = memref.load %arg1[%51] : memref<8xi32, #tpu.memory_space<smem>>
    %c3_i32_12 = arith.constant 3 : i32
    %53 = arith.addi %0, %c3_i32_12 : i32
    %54 = arith.index_cast %53 : i32 to index
    %55 = memref.load %arg2[%54] : memref<8xi32, #tpu.memory_space<smem>>
    %c3_i32_13 = arith.constant 3 : i32
    %56 = vector.broadcast %c3_i32_13 : i32 to vector<8x1xi32>
    %57 = arith.cmpi eq, %2, %56 : vector<8x1xi32>
    %58 = vector.broadcast %52 : i32 to vector<8x1xi32>
    %59 = arith.select %57, %58, %44 : vector<8x1xi1>, vector<8x1xi32>
    %c3_i32_14 = arith.constant 3 : i32
    %60 = vector.broadcast %c3_i32_14 : i32 to vector<8x1xi32>
    %61 = arith.cmpi eq, %2, %60 : vector<8x1xi32>
    %62 = vector.broadcast %55 : i32 to vector<8x1xi32>
    %63 = arith.select %61, %62, %48 : vector<8x1xi1>, vector<8x1xi32>
    %64 = arith.maxsi %49, %55 : i32
    %c4_i32 = arith.constant 4 : i32
    %65 = arith.addi %0, %c4_i32 : i32
    %66 = arith.index_cast %65 : i32 to index
    %67 = memref.load %arg1[%66] : memref<8xi32, #tpu.memory_space<smem>>
    %c4_i32_15 = arith.constant 4 : i32
    %68 = arith.addi %0, %c4_i32_15 : i32
    %69 = arith.index_cast %68 : i32 to index
    %70 = memref.load %arg2[%69] : memref<8xi32, #tpu.memory_space<smem>>
    %c4_i32_16 = arith.constant 4 : i32
    %71 = vector.broadcast %c4_i32_16 : i32 to vector<8x1xi32>
    %72 = arith.cmpi eq, %2, %71 : vector<8x1xi32>
    %73 = vector.broadcast %67 : i32 to vector<8x1xi32>
    %74 = arith.select %72, %73, %59 : vector<8x1xi1>, vector<8x1xi32>
    %c4_i32_17 = arith.constant 4 : i32
    %75 = vector.broadcast %c4_i32_17 : i32 to vector<8x1xi32>
    %76 = arith.cmpi eq, %2, %75 : vector<8x1xi32>
    %77 = vector.broadcast %70 : i32 to vector<8x1xi32>
    %78 = arith.select %76, %77, %63 : vector<8x1xi1>, vector<8x1xi32>
    %79 = arith.maxsi %64, %70 : i32
    %c5_i32 = arith.constant 5 : i32
    %80 = arith.addi %0, %c5_i32 : i32
    %81 = arith.index_cast %80 : i32 to index
    %82 = memref.load %arg1[%81] : memref<8xi32, #tpu.memory_space<smem>>
    %c5_i32_18 = arith.constant 5 : i32
    %83 = arith.addi %0, %c5_i32_18 : i32
    %84 = arith.index_cast %83 : i32 to index
    %85 = memref.load %arg2[%84] : memref<8xi32, #tpu.memory_space<smem>>
    %c5_i32_19 = arith.constant 5 : i32
    %86 = vector.broadcast %c5_i32_19 : i32 to vector<8x1xi32>
    %87 = arith.cmpi eq, %2, %86 : vector<8x1xi32>
    %88 = vector.broadcast %82 : i32 to vector<8x1xi32>
    %89 = arith.select %87, %88, %74 : vector<8x1xi1>, vector<8x1xi32>
    %c5_i32_20 = arith.constant 5 : i32
    %90 = vector.broadcast %c5_i32_20 : i32 to vector<8x1xi32>
    %91 = arith.cmpi eq, %2, %90 : vector<8x1xi32>
    %92 = vector.broadcast %85 : i32 to vector<8x1xi32>
    %93 = arith.select %91, %92, %78 : vector<8x1xi1>, vector<8x1xi32>
    %94 = arith.maxsi %79, %85 : i32
    %c6_i32 = arith.constant 6 : i32
    %95 = arith.addi %0, %c6_i32 : i32
    %96 = arith.index_cast %95 : i32 to index
    %97 = memref.load %arg1[%96] : memref<8xi32, #tpu.memory_space<smem>>
    %c6_i32_21 = arith.constant 6 : i32
    %98 = arith.addi %0, %c6_i32_21 : i32
    %99 = arith.index_cast %98 : i32 to index
    %100 = memref.load %arg2[%99] : memref<8xi32, #tpu.memory_space<smem>>
    %c6_i32_22 = arith.constant 6 : i32
    %101 = vector.broadcast %c6_i32_22 : i32 to vector<8x1xi32>
    %102 = arith.cmpi eq, %2, %101 : vector<8x1xi32>
    %103 = vector.broadcast %97 : i32 to vector<8x1xi32>
    %104 = arith.select %102, %103, %89 : vector<8x1xi1>, vector<8x1xi32>
    %c6_i32_23 = arith.constant 6 : i32
    %105 = vector.broadcast %c6_i32_23 : i32 to vector<8x1xi32>
    %106 = arith.cmpi eq, %2, %105 : vector<8x1xi32>
    %107 = vector.broadcast %100 : i32 to vector<8x1xi32>
    %108 = arith.select %106, %107, %93 : vector<8x1xi1>, vector<8x1xi32>
    %109 = arith.maxsi %94, %100 : i32
    %c7_i32 = arith.constant 7 : i32
    %110 = arith.addi %0, %c7_i32 : i32
    %111 = arith.index_cast %110 : i32 to index
    %112 = memref.load %arg1[%111] : memref<8xi32, #tpu.memory_space<smem>>
    %c7_i32_24 = arith.constant 7 : i32
    %113 = arith.addi %0, %c7_i32_24 : i32
    %114 = arith.index_cast %113 : i32 to index
    %115 = memref.load %arg2[%114] : memref<8xi32, #tpu.memory_space<smem>>
    %c7_i32_25 = arith.constant 7 : i32
    %116 = vector.broadcast %c7_i32_25 : i32 to vector<8x1xi32>
    %117 = arith.cmpi eq, %2, %116 : vector<8x1xi32>
    %118 = vector.broadcast %112 : i32 to vector<8x1xi32>
    %119 = arith.select %117, %118, %104 : vector<8x1xi1>, vector<8x1xi32>
    %c7_i32_26 = arith.constant 7 : i32
    %120 = vector.broadcast %c7_i32_26 : i32 to vector<8x1xi32>
    %121 = arith.cmpi eq, %2, %120 : vector<8x1xi32>
    %122 = vector.broadcast %115 : i32 to vector<8x1xi32>
    %123 = arith.select %121, %122, %108 : vector<8x1xi1>, vector<8x1xi32>
    %124 = arith.maxsi %109, %115 : i32
    %c16_i32 = arith.constant 16 : i32
    %125 = arith.minsi %124, %c16_i32 : i32
    %126 = vector.broadcast %119 : vector<8x1xi32> to vector<8x128xi32>
    %127 = arith.cmpi sle, %1, %126 : vector<8x128xi32>
    %c0_i32_27 = arith.constant 0 : i32
    %128 = vector.broadcast %c0_i32_27 : i32 to vector<8x128xi32>
    %129 = arith.cmpi eq, %1, %128 : vector<8x128xi32>
    %c0 = arith.constant 0 : index
    %c0_28 = arith.constant 0 : index
    %c0_29 = arith.constant 0 : index
    %c0_30 = arith.constant 0 : index
    %130 = vector.load %arg3[%c0, %c0_28, %c0_29, %c0_30] : memref<1x16x8x128xf32, #tpu.memory_space<vmem>>, vector<1x1x8x128xf32>
    %131 = vector.shape_cast %130 : vector<1x1x8x128xf32> to vector<8x128xf32>
    %cst = arith.constant -1.000000e+30 : f32
    %132 = vector.broadcast %cst : f32 to vector<8x128xf32>
    %133 = arith.select %129, %131, %132 : vector<8x128xi1>, vector<8x128xf32>
    %c1_i32_31 = arith.constant 1 : i32
    %134 = vector.broadcast %c1_i32_31 : i32 to vector<8x128xi32>
    %135 = arith.cmpi eq, %1, %134 : vector<8x128xi32>
    %cst_32 = arith.constant -1.000000e+30 : f32
    %136 = vector.broadcast %cst_32 : f32 to vector<8x128xf32>
    %137 = arith.select %135, %131, %136 : vector<8x128xi1>, vector<8x128xf32>
    %cst_33 = arith.constant -1.000000e+30 : f32
    %138 = vector.broadcast %cst_33 : f32 to vector<8x128xf32>
    %139 = arith.select %127, %131, %138 : vector<8x128xi1>, vector<8x128xf32>
    %cst_34 = arith.constant dense<0xFF800000> : vector<8xf32>
    %140 = vector.multi_reduction <maximumf>, %139, %cst_34 [1] : vector<8x128xf32> to vector<8xf32>
    %141 = vector.shape_cast %140 : vector<8xf32> to vector<8x1xf32>
    %142 = vector.broadcast %141 : vector<8x1xf32> to vector<8x128xf32>
    %143 = arith.subf %139, %142 : vector<8x128xf32>
    %144 = math.exp %143 : vector<8x128xf32>
    %cst_35 = arith.constant dense<0.000000e+00> : vector<8xf32>
    %145 = vector.multi_reduction <add>, %144, %cst_35 [1] : vector<8x128xf32> to vector<8xf32>
    %146 = vector.shape_cast %145 : vector<8xf32> to vector<8x1xf32>
    %147 = math.log %146 : vector<8x1xf32>
    %148 = arith.addf %141, %147 : vector<8x1xf32>
    %c1_i32_36 = arith.constant 1 : i32
    %149 = arith.subi %125, %c1_i32_36 : i32
    %150 = arith.addi %c1_i32_36, %149 : i32
    %c1_i32_37 = arith.constant 1 : i32
    %151:3 = scf.for %arg5 = %c1_i32_36 to %150 step %c1_i32_37 iter_args(%arg6 = %133, %arg7 = %137, %arg8 = %148) -> (vector<8x128xf32>, vector<8x128xf32>, vector<8x1xf32>)  : i32 {
      %c0_51 = arith.constant 0 : index
      %191 = arith.index_cast %arg5 : i32 to index
      %c0_52 = arith.constant 0 : index
      %c0_53 = arith.constant 0 : index
      %192 = vector.load %arg3[%c0_51, %191, %c0_52, %c0_53] : memref<1x16x8x128xf32, #tpu.memory_space<vmem>>, vector<1x1x8x128xf32>
      %193 = vector.shape_cast %192 : vector<1x1x8x128xf32> to vector<8x128xf32>
      %194 = arith.maximumf %arg6, %arg7 : vector<8x128xf32>
      %195 = arith.subf %arg6, %arg7 : vector<8x128xf32>
      %196 = math.absf %195 : vector<8x128xf32>
      %cst_54 = arith.constant 0.000000e+00 : f32
      %197 = vector.broadcast %cst_54 : f32 to vector<8x128xf32>
      %198 = arith.subf %197, %196 : vector<8x128xf32>
      %199 = math.exp %198 : vector<8x128xf32>
      %cst_55 = arith.constant 1.000000e+00 : f32
      %200 = vector.broadcast %cst_55 : f32 to vector<8x128xf32>
      %201 = arith.addf %200, %199 : vector<8x128xf32>
      %202 = math.log %201 : vector<8x128xf32>
      %203 = arith.addf %194, %202 : vector<8x128xf32>
      %204 = vector.extract_strided_slice %193 {offsets = [0, 0], sizes = [8, 1], strides = [1, 1]} : vector<8x128xf32> to vector<8x1xf32>
      %205 = vector.broadcast %204 : vector<8x1xf32> to vector<8x128xf32>
      %206 = arith.addf %205, %203 : vector<8x128xf32>
      %c1_i32_56 = arith.constant 1 : i32
      %207 = tpu.dynamic_rotate %203 by %c1_i32_56 dim 1 : vector<8x128xf32>, i32 -> vector<8x128xf32>
      %208 = arith.maximumf %arg7, %207 : vector<8x128xf32>
      %209 = arith.subf %arg7, %207 : vector<8x128xf32>
      %210 = math.absf %209 : vector<8x128xf32>
      %cst_57 = arith.constant 0.000000e+00 : f32
      %211 = vector.broadcast %cst_57 : f32 to vector<8x128xf32>
      %212 = arith.subf %211, %210 : vector<8x128xf32>
      %213 = math.exp %212 : vector<8x128xf32>
      %cst_58 = arith.constant 1.000000e+00 : f32
      %214 = vector.broadcast %cst_58 : f32 to vector<8x128xf32>
      %215 = arith.addf %214, %213 : vector<8x128xf32>
      %216 = math.log %215 : vector<8x128xf32>
      %217 = arith.addf %208, %216 : vector<8x128xf32>
      %218 = arith.addf %193, %217 : vector<8x128xf32>
      %cst_59 = arith.constant -1.000000e+30 : f32
      %219 = vector.broadcast %cst_59 : f32 to vector<8x128xf32>
      %220 = arith.select %129, %219, %218 : vector<8x128xi1>, vector<8x128xf32>
      %221 = vector.broadcast %arg5 : i32 to vector<8x1xi32>
      %222 = arith.cmpi slt, %221, %123 : vector<8x1xi32>
      %cst_60 = arith.constant -1.000000e+30 : f32
      %223 = vector.broadcast %cst_60 : f32 to vector<8x128xf32>
      %224 = arith.select %127, %193, %223 : vector<8x128xi1>, vector<8x128xf32>
      %cst_61 = arith.constant dense<0xFF800000> : vector<8xf32>
      %225 = vector.multi_reduction <maximumf>, %224, %cst_61 [1] : vector<8x128xf32> to vector<8xf32>
      %226 = vector.shape_cast %225 : vector<8xf32> to vector<8x1xf32>
      %227 = vector.broadcast %226 : vector<8x1xf32> to vector<8x128xf32>
      %228 = arith.subf %224, %227 : vector<8x128xf32>
      %229 = math.exp %228 : vector<8x128xf32>
      %cst_62 = arith.constant dense<0.000000e+00> : vector<8xf32>
      %230 = vector.multi_reduction <add>, %229, %cst_62 [1] : vector<8x128xf32> to vector<8xf32>
      %231 = vector.shape_cast %230 : vector<8xf32> to vector<8x1xf32>
      %232 = math.log %231 : vector<8x1xf32>
      %233 = arith.addf %226, %232 : vector<8x1xf32>
      %cst_63 = arith.constant 0.000000e+00 : f32
      %234 = vector.broadcast %cst_63 : f32 to vector<8x1xf32>
      %235 = arith.select %222, %233, %234 : vector<8x1xi1>, vector<8x1xf32>
      %236 = arith.addf %arg8, %235 : vector<8x1xf32>
      %237 = vector.shape_cast %222 : vector<8x1xi1> to vector<8x1xi1>
      %238 = vector.broadcast %237 : vector<8x1xi1> to vector<8x128xi1>
      %239 = arith.select %238, %206, %arg6 : vector<8x128xi1>, vector<8x128xf32>
      %240 = vector.shape_cast %222 : vector<8x1xi1> to vector<8x1xi1>
      %241 = vector.broadcast %240 : vector<8x1xi1> to vector<8x128xi1>
      %242 = arith.select %241, %220, %arg7 : vector<8x128xi1>, vector<8x128xf32>
      scf.yield %239, %242, %236 : vector<8x128xf32>, vector<8x128xf32>, vector<8x1xf32>
    }
    %152 = vector.broadcast %119 : vector<8x1xi32> to vector<8x128xi32>
    %153 = arith.cmpi eq, %1, %152 : vector<8x128xi32>
    %cst_38 = arith.constant -1.000000e+30 : f32
    %154 = vector.broadcast %cst_38 : f32 to vector<8x128xf32>
    %155 = arith.select %153, %151#0, %154 : vector<8x128xi1>, vector<8x128xf32>
    %cst_39 = arith.constant -1.000000e+30 : f32
    %156 = vector.broadcast %cst_39 : f32 to vector<8x128xf32>
    %157 = arith.select %153, %151#1, %156 : vector<8x128xi1>, vector<8x128xf32>
    %cst_40 = arith.constant dense<0xFF800000> : vector<8xf32>
    %158 = vector.multi_reduction <maximumf>, %155, %cst_40 [1] : vector<8x128xf32> to vector<8xf32>
    %159 = vector.shape_cast %158 : vector<8xf32> to vector<8x1xf32>
    %cst_41 = arith.constant dense<0xFF800000> : vector<8xf32>
    %160 = vector.multi_reduction <maximumf>, %157, %cst_41 [1] : vector<8x128xf32> to vector<8xf32>
    %161 = vector.shape_cast %160 : vector<8xf32> to vector<8x1xf32>
    %162 = arith.maximumf %159, %161 : vector<8x1xf32>
    %163 = vector.broadcast %162 : vector<8x1xf32> to vector<8x128xf32>
    %164 = arith.subf %155, %163 : vector<8x128xf32>
    %165 = math.exp %164 : vector<8x128xf32>
    %cst_42 = arith.constant dense<0.000000e+00> : vector<8xf32>
    %166 = vector.multi_reduction <add>, %165, %cst_42 [1] : vector<8x128xf32> to vector<8xf32>
    %167 = vector.shape_cast %166 : vector<8xf32> to vector<8x1xf32>
    %168 = vector.broadcast %162 : vector<8x1xf32> to vector<8x128xf32>
    %169 = arith.subf %157, %168 : vector<8x128xf32>
    %170 = math.exp %169 : vector<8x128xf32>
    %cst_43 = arith.constant dense<0.000000e+00> : vector<8xf32>
    %171 = vector.multi_reduction <add>, %170, %cst_43 [1] : vector<8x128xf32> to vector<8xf32>
    %172 = vector.shape_cast %171 : vector<8xf32> to vector<8x1xf32>
    %173 = arith.addf %167, %172 : vector<8x1xf32>
    %174 = math.log %173 : vector<8x1xf32>
    %175 = arith.addf %162, %174 : vector<8x1xf32>
    %176 = arith.subf %175, %151#2 : vector<8x1xf32>
    %c1_i32_44 = arith.constant 1 : i32
    %177 = vector.broadcast %c1_i32_44 : i32 to vector<8x1xi32>
    %178 = arith.maxsi %119, %177 : vector<8x1xi32>
    %179 = arith.sitofp %178 : vector<8x1xi32> to vector<8x1xf32>
    %cst_45 = arith.constant -1.000000e+20 : f32
    %180 = vector.broadcast %cst_45 : f32 to vector<8x1xf32>
    %181 = arith.cmpf olt, %176, %180 : vector<8x1xf32>
    %cst_46 = arith.constant 0.000000e+00 : f32
    %182 = vector.broadcast %cst_46 : f32 to vector<8x1xf32>
    %183 = arith.subf %182, %176 : vector<8x1xf32>
    %184 = arith.divf %183, %179 : vector<8x1xf32>
    %cst_47 = arith.constant 0.000000e+00 : f32
    %185 = vector.broadcast %cst_47 : f32 to vector<8x1xf32>
    %186 = arith.select %181, %185, %184 : vector<8x1xi1>, vector<8x1xf32>
    %187 = vector.shape_cast %186 : vector<8x1xf32> to vector<1x8x1xf32>
    %188 = vector.shape_cast %187 : vector<1x8x1xf32> to vector<1x8x1xf32>
    %189 = vector.broadcast %188 : vector<1x8x1xf32> to vector<1x8x128xf32>
    %c0_48 = arith.constant 0 : index
    %c0_49 = arith.constant 0 : index
    %c0_50 = arith.constant 0 : index
    %190 = vector.load %arg4[%c0_48, %c0_49, %c0_50] : memref<1x8x128xf32, #tpu.memory_space<vmem>>, vector<1x8x128xf32>
    tpu.vector_store %arg4[%c0_48, %c0_49, %c0_50], %189 {strides = array<i32>} : memref<1x8x128xf32, #tpu.memory_space<vmem>>, vector<1x8x128xf32>,
    return
  }
  func.func @transform_0(%arg0: i32, %arg1: memref<8xi32, #tpu.memory_space<smem>>, %arg2: memref<8xi32, #tpu.memory_space<smem>>) -> (i32, i32, i32, i32) {
    %c0_i32 = arith.constant 0 : i32
    %c0_i32_0 = arith.constant 0 : i32
    %c0_i32_1 = arith.constant 0 : i32
    %c0_i32_2 = arith.constant 0 : i32
    return %arg0, %c0_i32, %c0_i32_0, %c0_i32_1 : i32, i32, i32, i32
  }
  func.func @transform_1(%arg0: i32, %arg1: memref<8xi32, #tpu.memory_space<smem>>, %arg2: memref<8xi32, #tpu.memory_space<smem>>) -> (i32, i32, i32) {
    %c0_i32 = arith.constant 0 : i32
    %c0_i32_0 = arith.constant 0 : i32
    %c0_i32_1 = arith.constant 0 : i32
    return %arg0, %c0_i32, %c0_i32_0 : i32, i32, i32
  }
}

</mosaic_0001>

<llo_original>
// kernel: tpu_custom_call.1
$region0: #{tpu_custom_call.1}
  #allocation0 [shape = 'u32[]', space=smem, size = 0x4, offset = 0x4, fixed_abs, tag = 'smem constant byte address 0x4 - core index']
  #allocation1 [shape = 'u32[144,128]{1,0:T(1,128)}', space=vmem, size = 0x12000, scoped, tag = 'internal scratch']
  #allocation2 [shape = 's32[1]{0}', space=sflag, size = 0x4, scoped, tag = 'scoped memory for tpu_custom_call.1']
  #allocation3 [shape = 'u8[512]{0}', space=smem, size = 0x200, scoped, tag = 'prefetched SMEM operand 0']
  #allocation4 [shape = 'u8[512]{0}', space=smem, size = 0x200, scoped, tag = 'prefetched SMEM operand 1']
  %s0 = inlined_call_operand.hbm [shape: s32[8], index: 0, kind: input, shape index: {}]
  %s1 = inlined_call_operand.vmem [shape: s32[8], index: 1, kind: input, shape index: {}]
  %s2 = inlined_call_operand.hbm [shape: f32[1,16,8,128], index: 2, kind: input, shape index: {}]
  %s3 = inlined_call_operand.hbm [shape: f32[1,8,128], index: 3, kind: output, shape index: {}]
  %s4 = sld [smem:[#allocation0]]
  $region25: #{tpu_custom_call.1} parent=0
    _
  %s6 = ssub.s32 1, %s4
  %s7 = scalar_select 0, %s6, %s4
  %9 = dma.hbm_to_smem %s0, 16, [#allocation3], [#allocation2]
  %s10 = sshll.u32 %s1, 4
  %s11 = int_to_ptr.vmem [resolvable:$true] %s10
  %13 = dma.vmem_to_smem %s11, 16, [#allocation4], [#allocation2]
  %14 = dma.done [#allocation2], 32
  %15 = sfence
  $region1: #{tpu_custom_call.1} parent=0
    #allocation5 [shape = 'u8[65536]{0}', space=vmem, size = 0x10000, scoped, tag = 'input window, operand 2, single buffered']
    #allocation6 [shape = 's32[1]{0}', space=sflag, size = 0x4, scoped, tag = 'scoped memory for tpu_custom_call.1']
    #allocation7 [shape = 's32[1]{0}', space=sflag, size = 0x4, scoped, tag = 'scoped memory for tpu_custom_call.1']
    #allocation8 [shape = 'u8[4096]{0}', space=vmem, size = 0x1000, scoped, tag = 'output window, operand 0, single buffered']
    %16 = vsyncpa [#allocation6], 0
    %17 = vsyncpa [#allocation7], 0
    // Predicated region
    $region2: #{tpu_custom_call.1} parent=1 // pred_check
      _
    $region3: #{tpu_custom_call.1} parent=1 // pred_check_branch
      %19 = sbr.rel (0) target = $region5
    $region4: #{tpu_custom_call.1} parent=1 // pred_region
      %s21 = ssub.s32 2048, 2048
      %22 = vsyncadd [#allocation6], %s21
      %s23 = sshll.u32 [#allocation5], 4
      %s24 = int_to_ptr.vmem [resolvable:$true] %s23
      %29 = dma.hbm_to_vmem [thread:$0]  %s2, 2048, %s24, [#allocation6], 128, 128, 8
    $region5: #{tpu_custom_call.1} parent=1 // pred_fallthru
      _
    // Predicated region
    $region6: #{tpu_custom_call.1} parent=1 // pred_check
      _
    $region7: #{tpu_custom_call.1} parent=1 // pred_check_branch
      %31 = sbr.rel (0) target = $region9
    $region8: #{tpu_custom_call.1} parent=1 // pred_region
      %32 = dma.done [#allocation6], 2048
    $region9: #{tpu_custom_call.1} parent=1 // pred_fallthru
      _
    %s33 = smul.u32 0, 8
    %v34 = vlaneseq
    %v35 = vand.u32 %v34, 127
    %v36 = vlaneseq
    %v37 = vshrl.u32 %v36, 7
    %s38 = sld [smem:[#allocation3 + %s33]]
    %s39 = sld [smem:[#allocation4 + %s33]]
    %vm40 = vcmp.eq.s32.totalorder %v37, 0
    %v41 = vstv %s38
    %v42 = vsel %vm40, %v41, 0
    %v43 = vstv %s39
    %v44 = vsel %vm40, %v43, 0
    %p45 = scmp.gt.s32.totalorder %s39, 1
    %s46 = scalar_select %p45, %s39, 1
    %s47 = sadd.s32 %s33, 1
    %s48 = sld [smem:[#allocation3 + %s47]]
    %s49 = sld [smem:[#allocation4 + %s47]]
    %vm50 = vcmp.eq.s32.totalorder %v37, 1
    %v51 = vstv %s48
    %v52 = vsel %vm50, %v51, %v42
    %v53 = vstv %s49
    %v54 = vsel %vm50, %v53, %v44
    %p55 = scmp.gt.s32.totalorder %s46, %s49
    %s56 = scalar_select %p55, %s46, %s49
    %s57 = sadd.s32 %s33, 2
    %s58 = sld [smem:[#allocation3 + %s57]]
    %s59 = sld [smem:[#allocation4 + %s57]]
    %vm60 = vcmp.eq.s32.totalorder %v37, 2
    %v61 = vstv %s58
    %v62 = vsel %vm60, %v61, %v52
    %v63 = vstv %s59
    %v64 = vsel %vm60, %v63, %v54
    %p65 = scmp.gt.s32.totalorder %s56, %s59
    %s66 = scalar_select %p65, %s56, %s59
    %s67 = sadd.s32 %s33, 3
    %s68 = sld [smem:[#allocation3 + %s67]]
    %s69 = sld [smem:[#allocation4 + %s67]]
    %vm70 = vcmp.eq.s32.totalorder %v37, 3
    %v71 = vstv %s68
    %v72 = vsel %vm70, %v71, %v62
    %v73 = vstv %s69
    %v74 = vsel %vm70, %v73, %v64
    %p75 = scmp.gt.s32.totalorder %s66, %s69
    %s76 = scalar_select %p75, %s66, %s69
    %s77 = sadd.s32 %s33, 4
    %s78 = sld [smem:[#allocation3 + %s77]]
    %s79 = sld [smem:[#allocation4 + %s77]]
    %vm80 = vcmp.eq.s32.totalorder %v37, 4
    %v81 = vstv %s78
    %v82 = vsel %vm80, %v81, %v72
    %v83 = vstv %s79
    %v84 = vsel %vm80, %v83, %v74
    %p85 = scmp.gt.s32.totalorder %s76, %s79
    %s86 = scalar_select %p85, %s76, %s79
    %s87 = sadd.s32 %s33, 5
    %s88 = sld [smem:[#allocation3 + %s87]]
    %s89 = sld [smem:[#allocation4 + %s87]]
    %vm90 = vcmp.eq.s32.totalorder %v37, 5
    %v91 = vstv %s88
    %v92 = vsel %vm90, %v91, %v82
    %v93 = vstv %s89
    %v94 = vsel %vm90, %v93, %v84
    %p95 = scmp.gt.s32.totalorder %s86, %s89
    %s96 = scalar_select %p95, %s86, %s89
    %s97 = sadd.s32 %s33, 6
    %s98 = sld [smem:[#allocation3 + %s97]]
    %s99 = sld [smem:[#allocation4 + %s97]]
    %vm100 = vcmp.eq.s32.totalorder %v37, 6
    %v101 = vstv %s98
    %v102 = vsel %vm100, %v101, %v92
    %v103 = vstv %s99
    %v104 = vsel %vm100, %v103, %v94
    %p105 = scmp.gt.s32.totalorder %s96, %s99
    %s106 = scalar_select %p105, %s96, %s99
    %s107 = sadd.s32 %s33, 7
    %s108 = sld [smem:[#allocation3 + %s107]]
    %s109 = sld [smem:[#allocation4 + %s107]]
    %vm110 = vcmp.eq.s32.totalorder %v37, 7
    %v111 = vstv %s108
    %v112 = vsel %vm110, %v111, %v102
    %v113 = vstv %s109
    %v114 = vsel %vm110, %v113, %v104
    %p115 = scmp.gt.s32.totalorder %s106, %s109
    %s116 = scalar_select %p115, %s106, %s109
    %p117 = scmp.lt.s32.totalorder %s116, 16
    %s118 = scalar_select %p117, %s116, 16
    %vm119 = vcmp.le.s32.totalorder %v35, %v112
    %vm120 = vcmp.eq.s32.totalorder %v35, 0
    %v121 = vld [vmem:[#allocation5] sm:$0xff]
    %v122 = vsel %vm120, %v121, -1e+30
    %vm123 = vcmp.eq.s32.totalorder %v35, 1
    %v124 = vsel %vm123, %v121, -1e+30
    %v125 = vsel %vm119, %v121, -1e+30
    %126 = vmax.xlane.f32.xlu0 %v125
    %v127 = vpop.xlane.xlu0 %126
    %v128 = vsub.f32 %v125, %v127
    %v129 = vmul.f32 %v128, 1.442695
    %v130 = vpow.pop %v129
    %131 = vadd.xlane.f32.xlu0 %v130
    %v132 = vpop.xlane.xlu0 %131
    %v133 = vlog2.pop %v132
    %v134 = vmul.f32 %v133, 0.6931472
    %v135 = vadd.f32 %v127, %v134
    // While loop
    $region10: #{tpu_custom_call.1} parent=1 // loop_pre_header
      _
    $region11: #{tpu_custom_call.1} parent=1 // loop_header
      %s137 = sphi 1, %s139
      %p138 = scmp.ge.s32.totalorder %s137, %s118
      %v142 = vphi %v122, %v195
      %v143 = vphi %v124, %v196
      %v144 = vphi %v135, %v192
    $region12: #{tpu_custom_call.1} parent=1 // loop_header_branch
      %141 = sbr.rel (%p138) target = $region16
    $region13: #{tpu_custom_call.1} parent=1 // loop_body
      %s145 = smul.u32 %s137, 8
      %s146 = scalar_lea.vmem [#allocation5], %s145
      %v147 = vld [vmem:[%s146] sm:$0xff]
      %v148 = vmax.f32 %v142, %v143
      %v149 = vsub.f32 %v142, %v143
      %v150 = vand.u32 2147483647, %v149
      %v151 = vsub.f32 0.0, %v150
      %v152 = vmul.f32 %v151, 1.442695
      %v153 = vpow.pop %v152
      %v154 = vadd.f32 %v153, 1.0
      %v155 = vlog2.pop %v154
      %v156 = vmul.f32 %v155, 0.6931472
      %v157 = vadd.f32 %v148, %v156
      %159 = vset.pattern.permute.xlu0 0
      %160 = vperm.xlu0 %159, %v147
      %v161 = vpop.permute.xlu0 %160
      %v163 = vadd.f32 %v161, %v157
      %164 = vrot.lane.b32.xlu0 %v157, 1
      %v165 = vpop.permute.xlu0 %164
      %v166 = vmax.f32 %v143, %v165
      %v167 = vsub.f32 %v143, %v165
      %v168 = vand.u32 2147483647, %v167
      %v169 = vsub.f32 0.0, %v168
      %v170 = vmul.f32 %v169, 1.442695
      %v171 = vpow.pop %v170
      %v172 = vadd.f32 %v171, 1.0
      %v173 = vlog2.pop %v172
      %v174 = vmul.f32 %v173, 0.6931472
      %v175 = vadd.f32 %v166, %v174
      %v176 = vadd.f32 %v147, %v175
      %v177 = vsel %vm120, -1e+30, %v176
      %v178 = vstv %s137
      %vm179 = vcmp.lt.s32.totalorder %v178, %v114
      %v180 = vsel %vm119, %v147, -1e+30
      %181 = vmax.xlane.f32.xlu0 %v180
      %v182 = vpop.xlane.xlu0 %181
      %v183 = vsub.f32 %v180, %v182
      %v184 = vmul.f32 %v183, 1.442695
      %v185 = vpow.pop %v184
      %186 = vadd.xlane.f32.xlu0 %v185
      %v187 = vpop.xlane.xlu0 %186
      %v188 = vlog2.pop %v187
      %v189 = vmul.f32 %v188, 0.6931472
      %v190 = vadd.f32 %v182, %v189
      %v191 = vsel %vm179, %v190, 0.0
      %v192 = vadd.f32 %v144, %v191
      %v193 = vsel %vm179, 1, 0
      %vm194 = vcmp.eq.s32.totalorder %v193, 1
      %v195 = vsel %vm194, %v163, %v142
      %v196 = vsel %vm194, %v177, %v143
    $region14: #{tpu_custom_call.1} parent=1 // loop_footer
      %s139 = sadd.s32 %s137, 1
    $region15: #{tpu_custom_call.1} parent=1 // loop_footer_branch
      %136 = sbr.rel target = $region11
    $region16: #{tpu_custom_call.1} parent=1 // loop_exit
      _
    %vm197 = vcmp.eq.s32.totalorder %v35, %v112
    %v198 = vsel %vm197, %v142, -1e+30
    %v199 = vsel %vm197, %v143, -1e+30
    %200 = vmax.xlane.f32.xlu0 %v198
    %v201 = vpop.xlane.xlu0 %200
    %202 = vmax.xlane.f32.xlu0 %v199
    %v203 = vpop.xlane.xlu0 %202
    %v204 = vmax.f32 %v201, %v203
    %v205 = vsub.f32 %v198, %v204
    %v206 = vmul.f32 %v205, 1.442695
    %v207 = vpow.pop %v206
    %208 = vadd.xlane.f32.xlu0 %v207
    %v209 = vpop.xlane.xlu0 %208
    %v210 = vsub.f32 %v199, %v204
    %v211 = vmul.f32 %v210, 1.442695
    %v212 = vpow.pop %v211
    %213 = vadd.xlane.f32.xlu0 %v212
    %v214 = vpop.xlane.xlu0 %213
    %v215 = vadd.f32 %v209, %v214
    %v216 = vlog2.pop %v215
    %v217 = vmul.f32 %v216, 0.6931472
    %v218 = vadd.f32 %v204, %v217
    %v219 = vsub.f32 %v218, %v144
    %vm220 = vcmp.gt.s32.totalorder %v112, 1
    %v221 = vsel %vm220, %v112, 1
    %v222 = vcvt.s32.f32 %v221
    %vm223 = vcmp.lt.f32.partialorder %v219, -1e+20
    %v224 = vsub.f32 0.0, %v219
    %v225 = vrcp.pop %v222
    %v226 = vmul.f32 %v224, %v225
    %v227 = vsel %vm223, 0.0, %v226
    %228 = vst [vmem:[#allocation8] sm:$0xff] %v227
    // Predicated region
    $region17: #{tpu_custom_call.1} parent=1 // pred_check
      _
    $region18: #{tpu_custom_call.1} parent=1 // pred_check_branch
      %230 = sbr.rel (0) target = $region20
    $region19: #{tpu_custom_call.1} parent=1 // pred_region
      %s232 = ssub.s32 128, 128
      %233 = vsyncadd [#allocation7], %s232
      %s235 = sshll.u32 [#allocation8], 4
      %s236 = int_to_ptr.vmem [resolvable:$true] %s235
      %238 = dma.vmem_to_hbm [thread:$0]  %s236, 128, %s3, [#allocation7]
    $region20: #{tpu_custom_call.1} parent=1 // pred_fallthru
      _
    // Predicated region
    $region21: #{tpu_custom_call.1} parent=1 // pred_check
      _
    $region22: #{tpu_custom_call.1} parent=1 // pred_check_branch
      %240 = sbr.rel (0) target = $region24
    $region23: #{tpu_custom_call.1} parent=1 // pred_region
      %241 = dma.done [#allocation7], 128
    $region24: #{tpu_custom_call.1} parent=1 // pred_fallthru
      _
    %242 = vsyncpa [#allocation6], 1
    %243 = vsyncpa [#allocation7], 1

</llo_original>
